<compile_context>
chip_gen: v5e
topology: v5e:2x2
jax: 0.10.0
libtpu: 0.0.40
codegen_flags: <defaults>
</compile_context>

<pallas_src>
import functools

import jax
import jax.numpy as jnp
from jax.experimental import pallas as pl
from jax.experimental.pallas import tpu as pltpu


def _embed_kernel(p_ref, w_ref, add_ref, out_ref):
    # p_ref:   (1, tt, K)   bf16 patch rows (row 0 of each batch = zeros -> cls slot)
    # w_ref:   (K, tn)      bf16 projection weight tile (VMEM-resident across batch)
    # add_ref: (1, tt, tn)  f32: cls row = cls + pos[0]; patch rows = conv_b + pos[t]
    # out_ref: (1, tt, tn)
    y = jnp.dot(p_ref[0], w_ref[...], preferred_element_type=jnp.float32)
    out_ref[0] = (y + add_ref[0]).astype(out_ref.dtype)


@functools.partial(jax.jit, static_argnames=("patch_size",))
def vit_embedding_pallas(x, conv_w, conv_b, cls_token, pos_embed, patch_size):
    """Forward pass of ViTEmbedding (non-distilled, drop_rate=0).

    x:         (B, C, H, W)   NCHW, like PyTorch
    conv_w:    (D, C, ph, pw) PyTorch Conv2d weight layout
    conv_b:    (D,)
    cls_token: (1, 1, D)
    pos_embed: (1, N + 1, D)
    returns    (B, N + 1, D)  in x.dtype
    """
    B, C, H, W = x.shape
    D = conv_w.shape[0]
    ph = pw = patch_size
    Hp, Wp = H // ph, W // pw
    N = Hp * Wp
    Ntok = N + 1
    K = C * ph * pw
    out_dtype = x.dtype
    out_itemsize = jnp.dtype(out_dtype).itemsize

    # ---- glue: extract non-overlapping patches, flatten in (c, kh, kw) order so the
    # ordering matches conv_w.reshape(D, C*ph*pw). Prepend one zero row per batch
    # element (the "cls slot"). Cast GEMM operands to bf16 (f32 accumulation inside).
    patches = x.reshape(B, C, Hp, ph, Wp, pw)
    patches = patches.transpose(0, 2, 4, 1, 3, 5).reshape(B, N, K)
    patches = jnp.pad(patches, ((0, 0), (1, 0), (0, 0)))                 # (B, Ntok, K)
    patches = patches.astype(jnp.bfloat16)

    w2d = conv_w.reshape(D, K).T.astype(jnp.bfloat16)                    # (K, D)

    # Additive term (f32):
    #   row 0      : cls_token + pos_embed[0]
    #   rows 1..N  : conv_b    + pos_embed[1..N]     (bias folded in)
    cls_row = (cls_token + pos_embed[:, :1, :]).astype(jnp.float32)      # (1, 1, D)
    patch_rows = (pos_embed[:, 1:, :] + conv_b[None, None, :]).astype(jnp.float32)
    add = jnp.concatenate([cls_row, patch_rows], axis=1)                 # (1, Ntok, D)

    # ---- tile sizes -------------------------------------------------------------
    # tn: full D whenever the double-buffered bf16 weight tile fits a ~12 MiB budget
    #     (ViT-B/16: 2*768*768*2 ≈ 2.25 MiB; patch-32/K=3072: ≈ 9 MiB) so the patch
    #     stream is read exactly once. Otherwise largest 128-multiple that fits.
    weight_budget = 12 * 1024 * 1024
    if D <= 256 or 2 * K * D * 2 <= weight_budget:
        tn = D
    else:
        tn = max(256, min(D, (weight_budget // (2 * K * 2)) // 128 * 128))

    # tt: token-tile rows; full dim when small, otherwise 512 (multiple of 8).
    # TODO(synk): on v6e with Ntok >= 1024 a 1024-row tile amortizes per-step overhead.
    tt = Ntok if Ntok <= 512 else 512

    # Per-tile VMEM budget (double-buffered streams + resident weight), with headroom.
    vmem_bytes = (2 * tt * K * 2          # patches tile (bf16)
                  + 2 * K * tn * 2        # weight tile  (bf16)
                  + 2 * tt * tn * 4       # add tile     (f32)
                  + 2 * tt * tn * out_itemsize)
    vmem_limit = min(56 << 20, max(32 << 20, (vmem_bytes * 3) // 2 + (4 << 20)))

    # ---- grid: (token tiles, D tiles, batch); batch innermost so `add` and the weight
    # keep a constant block index across it (fetched once, VMEM-resident).
    grid = (pl.cdiv(Ntok, tt), pl.cdiv(D, tn), B)

    out = pl.pallas_call(
        _embed_kernel,
        out_shape=jax.ShapeDtypeStruct((B, Ntok, D), out_dtype),
        grid_spec=pl.GridSpec(
            grid=grid,
            in_specs=[
                # patches: new tile per (token tile, batch) -> streamed once total
                pl.BlockSpec((1, tt, K), lambda i, j, b: (b, i, 0)),
                # weight: constant over batch (and token tiles) -> VMEM-resident
                pl.BlockSpec((K, tn), lambda i, j, b: (0, j)),
                # pos(+bias+cls) additive term: constant over batch -> VMEM-resident
                pl.BlockSpec((1, tt, tn), lambda i, j, b: (0, i, j)),
            ],
            out_specs=pl.BlockSpec((1, tt, tn), lambda i, j, b: (b, i, j)),
        ),
        compiler_params=pltpu.CompilerParams(
            dimension_semantics=("parallel", "parallel", "arbitrary"),
            allow_input_fusion=[True, False, False],
            vmem_limit_bytes=int(vmem_limit),
        ),
    )(patches, w2d, add)

    # pos_drop is nn.Dropout(p=0.0) -> identity; distilled=False so no dist_token branch.
    return out


def _reference(x, conv_w, conv_b, cls_token, pos_embed, patch_size):
    """Plain-JAX reference matching PyTorch semantics."""
    B = x.shape[0]
    D = conv_w.shape[0]
    y = jax.lax.conv_general_dilated(
        x, conv_w,
        window_strides=(patch_size, patch_size),
        padding="VALID",
        dimension_numbers=("NCHW", "OIHW", "NCHW"),
        precision=jax.lax.Precision.HIGHEST,
    ) + conv_b.reshape(1, D, 1, 1)
    y = y.reshape(B, D, -1).transpose(0, 2, 1)        # flatten(2).transpose(1,2)
    cls = jnp.broadcast_to(cls_token, (B, 1, D))
    y = jnp.concatenate([cls, y], axis=1)
    return y + pos_embed


if __name__ == "__main__":
    # Small config consistent with the module's forward:
    # img_size=16, patch_size=4, in_chans=4, embed_dim=32, batch=2
    B, C, H, W = 2, 4, 16, 16
    patch_size = 4
    D = 32
    N = (H // patch_size) * (W // patch_size)         # 16 patches -> seq 17

    key = jax.random.PRNGKey(0)
    k_x, k_w, k_b, k_cls, k_pos = jax.random.split(key, 5)

    x = jax.random.normal(k_x, (B, C, H, W), dtype=jnp.float32)

    # Deterministic "trunc_normal_(std=0.02)"-style parameter init.
    conv_w = 0.02 * jax.random.truncated_normal(
        k_w, -2.0, 2.0, (D, C, patch_size, patch_size), dtype=jnp.float32)
    conv_b = 0.02 * jax.random.truncated_normal(
        k_b, -2.0, 2.0, (D,), dtype=jnp.float32)
    cls_token = 0.02 * jax.random.truncated_normal(
        k_cls, -2.0, 2.0, (1, 1, D), dtype=jnp.float32)
    pos_embed = 0.02 * jax.random.truncated_normal(
        k_pos, -2.0, 2.0, (1, N + 1, D), dtype=jnp.float32)

    out = vit_embedding_pallas(x, conv_w, conv_b, cls_token, pos_embed,
                               patch_size)
    out = jax.block_until_ready(out)

    # Reference with the same bf16 rounding of the GEMM operands (kernel accumulates
    # in f32), so the comparison isolates kernel correctness from quantization.
    x_r = x.astype(jnp.bfloat16).astype(jnp.float32)
    w_r = conv_w.astype(jnp.bfloat16).astype(jnp.float32)
    ref = _reference(x_r, w_r, conv_b, cls_token, pos_embed, patch_size)

    assert out.shape == (B, N + 1, D), out.shape
    assert jnp.allclose(out.astype(jnp.float32), ref, atol=2e-3, rtol=2e-3), \
        float(jnp.max(jnp.abs(out.astype(jnp.float32) - ref)))

    print("KERNEL_OK")
</pallas_src>

<mosaic_0001>
module attributes {stable_mosaic.version = 11 : i64} {
  func.func @_embed_kernel(%arg0: i32, %arg1: i32, %arg2: i32, %arg3: memref<1x17x64xbf16, #tpu.memory_space<vmem>>, %arg4: memref<64x32xbf16, #tpu.memory_space<vmem>>, %arg5: memref<1x17x32xf32, #tpu.memory_space<vmem>>, %arg6: memref<1x17x32xf32, #tpu.memory_space<vmem>>) attributes {dimension_semantics = [#tpu.dimension_semantics<parallel>, #tpu.dimension_semantics<parallel>, #tpu.dimension_semantics<arbitrary>], iteration_bounds = array<i64: 1, 1, 2>, scalar_prefetch = 0 : i64, scratch_operands = 0 : i64, tpu.core_type = #tpu.core_type<tc>, window_params = [{transform_indices = @transform_0, window_bounds = array<i64: 1, 17, 64>}, {transform_indices = @transform_1, window_bounds = array<i64: 64, 32>}, {transform_indices = @transform_2, window_bounds = array<i64: 1, 17, 32>}, {transform_indices = @transform_3, window_bounds = array<i64: 1, 17, 32>}]} {
    %c0 = arith.constant 0 : index
    %c0_0 = arith.constant 0 : index
    %c0_1 = arith.constant 0 : index
    %0 = vector.load %arg3[%c0, %c0_0, %c0_1] : memref<1x17x64xbf16, #tpu.memory_space<vmem>>, vector<1x17x64xbf16>
    %1 = vector.shape_cast %0 : vector<1x17x64xbf16> to vector<17x64xbf16>
    %c0_2 = arith.constant 0 : index
    %c0_3 = arith.constant 0 : index
    %2 = vector.load %arg4[%c0_2, %c0_3] : memref<64x32xbf16, #tpu.memory_space<vmem>>, vector<64x32xbf16>
    %cst = arith.constant dense<0.000000e+00> : vector<17x32xf32>
    %3 = tpu.matmul %1, %2, %cst {dimension_numbers = #tpu.dot_dimension_numbers<[1], [0], [0], [1], [0, 0, 1, 1], [], []>} : vector<17x64xbf16>, vector<64x32xbf16>, vector<17x32xf32> -> vector<17x32xf32>
    %c0_4 = arith.constant 0 : index
    %c0_5 = arith.constant 0 : index
    %c0_6 = arith.constant 0 : index
    %4 = vector.load %arg5[%c0_4, %c0_5, %c0_6] : memref<1x17x32xf32, #tpu.memory_space<vmem>>, vector<1x17x32xf32>
    %5 = vector.shape_cast %4 : vector<1x17x32xf32> to vector<17x32xf32>
    %6 = arith.addf %3, %5 : vector<17x32xf32>
    %c0_7 = arith.constant 0 : index
    %c0_8 = arith.constant 0 : index
    %c0_9 = arith.constant 0 : index
    %7 = vector.load %arg6[%c0_7, %c0_8, %c0_9] : memref<1x17x32xf32, #tpu.memory_space<vmem>>, vector<1x17x32xf32>
    %8 = vector.shape_cast %7 : vector<1x17x32xf32> to vector<17x32xf32>
    %9 = vector.shape_cast %6 : vector<17x32xf32> to vector<1x17x32xf32>
    tpu.vector_store %arg6[%c0_7, %c0_8, %c0_9], %9 {strides = array<i32>} : memref<1x17x32xf32, #tpu.memory_space<vmem>>, vector<1x17x32xf32>,
    return
  }
  func.func @transform_0(%arg0: i32, %arg1: i32, %arg2: i32) -> (i32, i32, i32) {
    %c0_i32 = arith.constant 0 : i32
    %c0_i32_0 = arith.constant 0 : i32
    return %arg2, %arg0, %c0_i32 : i32, i32, i32
  }
  func.func @transform_1(%arg0: i32, %arg1: i32, %arg2: i32) -> (i32, i32) {
    %c0_i32 = arith.constant 0 : i32
    %c0_i32_0 = arith.constant 0 : i32
    return %c0_i32, %arg1 : i32, i32
  }
  func.func @transform_2(%arg0: i32, %arg1: i32, %arg2: i32) -> (i32, i32, i32) {
    %c0_i32 = arith.constant 0 : i32
    %c0_i32_0 = arith.constant 0 : i32
    return %c0_i32, %arg0, %arg1 : i32, i32, i32
  }
  func.func @transform_3(%arg0: i32, %arg1: i32, %arg2: i32) -> (i32, i32, i32) {
    %c0_i32 = arith.constant 0 : i32
    return %arg2, %arg0, %arg1 : i32, i32, i32
  }
}

</mosaic_0001>

<llo_original>
// kernel: vit_embedding_pallas.2
$region0: #{vit_embedding_pallas.2}
  #allocation0 [shape = 'u32[]', space=smem, size = 0x4, offset = 0x4, fixed_abs, tag = 'smem constant byte address 0x4 - core index']
  #allocation1 [shape = 'u32[72,128]{1,0:T(1,128)}', space=vmem, size = 0x9000, scoped, tag = 'internal scratch']
  #allocation2 [shape = 'u32[2048]{0}', space=vmem, size = 0x2000, scoped, tag = 'scoped memory for vit_embedding_pallas.2']
  #allocation3 [shape = 'u32[2048]{0}', space=vmem, size = 0x2000, scoped, tag = 'scoped memory for vit_embedding_pallas.2']
  #allocation4 [shape = 'u32[2048]{0}', space=vmem, size = 0x2000, scoped, tag = 'scoped memory for vit_embedding_pallas.2']
  #allocation5 [shape = 'u32[2048]{0}', space=vmem, size = 0x2000, scoped, tag = 'scoped memory for vit_embedding_pallas.2']
  #allocation6 [shape = 'u32[2048]{0}', space=vmem, size = 0x2000, scoped, tag = 'scoped memory for vit_embedding_pallas.2']
  %s0 = inlined_call_operand.vmem [shape: bf16[64,32], index: 0, kind: input, shape index: {}]
  %s1 = inlined_call_operand.vmem [shape: f32[1,17,32], index: 1, kind: input, shape index: {}]
  %s2 = inlined_call_operand.vmem [shape: bf16[2,16,64], index: 2, kind: input, shape index: {}]
  %s3 = inlined_call_operand.<no memory space> [shape: bf16[], index: 3, kind: input, shape index: {}]
  %s4 = inlined_call_operand.vmem [shape: f32[2,17,32], index: 4, kind: output, shape index: {}]
  %s5 = sld [smem:[#allocation0]]
  $region45: #{vit_embedding_pallas.2} parent=0
    _
  %s7 = ssub.s32 1, %s5
  %s8 = scalar_select 0, %s7, %s5
  %v9 = vstv %s3
  %v10 = vunpack.i.l.bf16 %v9
  %v12 = vunpack.i.h.bf16 %v9
  loop: start=0, step=1, limit=4
  $region2: #{vit_embedding_pallas.2} parent=0 // loop_pre_header
    _
  $region3: #{vit_embedding_pallas.2} parent=0 // loop_header
    %s15 = sphi 0, %s19
    %p16 = scmp.ge.s32.totalorder %s15, 4
    %s22 = sphi 0, %s41
    %s23 = sphi 0, %s37
    %s24 = sphi 0, %s33
    %s25 = sphi 0, %s22
    %s26 = sphi 0, %s23
    %s27 = sphi 0, %s24
    %s28 = sphi 0, %s25
    %s29 = sphi 0, %s26
    %s30 = sphi 0, %s27
    %s46 = sphi 0, %s48
    %s49 = sphi 0, %s46
    %s50 = sphi 0, %s49
    %s66 = sphi 0, %s50
    %s72 = sphi 0, %s74
    %s75 = sphi 0, %s72
    %s76 = sphi 0, %s75
    %s92 = sphi 0, %s76
    %s100 = sphi 0, %s102
    %s103 = sphi 0, %s100
    %s104 = sphi 0, %s103
    %s120 = sphi 0, %s104
    %s130 = sphi 0, %s132
    %s133 = sphi 0, %s130
    %s134 = sphi 0, %s133
    %s150 = sphi 0, %s134
  $region4: #{vit_embedding_pallas.2} parent=0 // loop_header_branch
    %18 = sbr.rel (%p16) target = $region8
  $region5: #{vit_embedding_pallas.2} parent=0 // loop_body
    %s20 = ssub.s32 %s15, 1
    %s21 = ssub.s32 %s15, 2
    %s31 = sadd.s32 1, %s24
    %p32 = scmp.ge.s32.totalorder %s31, 2
    %s33 = scalar_select %p32, 0, %s31
    %s34 = sadd.s32 1, %s23
    %s35 = scalar_select %p32, %s34, %s23
    %p36 = scmp.ge.s32.totalorder %s35, 1
    %s37 = scalar_select %p36, 0, %s35
    %s38 = sadd.s32 1, %s22
    %s39 = scalar_select %p36, %s38, %s22
    %p40 = scmp.ge.s32.totalorder %s39, 1
    %s41 = scalar_select %p40, 0, %s39
    %s42 = ssub.s32 %s24, %s33
    %s43 = ssub.s32 %s22, %s41
    %s44 = sor.u32 %s42, %s43
    %p45 = scmp.eq.s32.totalorder %s44, 0
    %s47 = sadd.s32 %s46, 1
    %s48 = scalar_select %p45, %s46, %s47
    %p51 = pneg %p45
    %p52 = scmp.eq.s32.totalorder %s15, 1
    %p53 = por %p51, %p52
    %p54 = scmp.ne.s32.totalorder %s46, %s49
    %p55 = scmp.eq.s32.totalorder %s15, 0
    %p56 = por %p54, %p55
    %p57 = scmp.ne.s32.totalorder %s46, %s49
    %p58 = scmp.eq.s32.totalorder %s20, 1
    %p59 = por %p57, %p58
    %p60 = scmp.ne.s32.totalorder %s49, %s50
    %p61 = scmp.eq.s32.totalorder %s20, 0
    %p62 = por %p60, %p61
    %p63 = scmp.ne.s32.totalorder %s49, %s50
    %p64 = scmp.eq.s32.totalorder %s21, 1
    %p65 = por %p63, %p64
    %p67 = scmp.ne.s32.totalorder %s50, %s66
    %p68 = scmp.eq.s32.totalorder %s21, 0
    %p69 = por %p67, %p68
    %s70 = ssub.s32 %s23, %s37
    %p71 = scmp.eq.s32.totalorder %s70, 0
    %s73 = sadd.s32 %s72, 1
    %s74 = scalar_select %p71, %s72, %s73
    %p77 = pneg %p71
    %p78 = scmp.eq.s32.totalorder %s15, 1
    %p79 = por %p77, %p78
    %p80 = scmp.ne.s32.totalorder %s72, %s75
    %p81 = scmp.eq.s32.totalorder %s15, 0
    %p82 = por %p80, %p81
    %p83 = scmp.ne.s32.totalorder %s72, %s75
    %p84 = scmp.eq.s32.totalorder %s20, 1
    %p85 = por %p83, %p84
    %p86 = scmp.ne.s32.totalorder %s75, %s76
    %p87 = scmp.eq.s32.totalorder %s20, 0
    %p88 = por %p86, %p87
    %p89 = scmp.ne.s32.totalorder %s75, %s76
    %p90 = scmp.eq.s32.totalorder %s21, 1
    %p91 = por %p89, %p90
    %p93 = scmp.ne.s32.totalorder %s76, %s92
    %p94 = scmp.eq.s32.totalorder %s21, 0
    %p95 = por %p93, %p94
    %s96 = ssub.s32 %s22, %s41
    %s97 = ssub.s32 %s23, %s37
    %s98 = sor.u32 %s96, %s97
    %p99 = scmp.eq.s32.totalorder %s98, 0
    %s101 = sadd.s32 %s100, 1
    %s102 = scalar_select %p99, %s100, %s101
    %p105 = pneg %p99
    %p106 = scmp.eq.s32.totalorder %s15, 1
    %p107 = por %p105, %p106
    %p108 = scmp.ne.s32.totalorder %s100, %s103
    %p109 = scmp.eq.s32.totalorder %s15, 0
    %p110 = por %p108, %p109
    %p111 = scmp.ne.s32.totalorder %s100, %s103
    %p112 = scmp.eq.s32.totalorder %s20, 1
    %p113 = por %p111, %p112
    %p114 = scmp.ne.s32.totalorder %s103, %s104
    %p115 = scmp.eq.s32.totalorder %s20, 0
    %p116 = por %p114, %p115
    %p117 = scmp.ne.s32.totalorder %s103, %s104
    %p118 = scmp.eq.s32.totalorder %s21, 1
    %p119 = por %p117, %p118
    %p121 = scmp.ne.s32.totalorder %s104, %s120
    %p122 = scmp.eq.s32.totalorder %s21, 0
    %p123 = por %p121, %p122
    %s124 = ssub.s32 %s24, %s33
    %s125 = ssub.s32 %s22, %s41
    %s126 = sor.u32 %s124, %s125
    %s127 = ssub.s32 %s23, %s37
    %s128 = sor.u32 %s126, %s127
    %p129 = scmp.eq.s32.totalorder %s128, 0
    %s131 = sadd.s32 %s130, 1
    %s132 = scalar_select %p129, %s130, %s131
    %p135 = pneg %p129
    %p136 = scmp.eq.s32.totalorder %s15, 1
    %p137 = por %p135, %p136
    %p138 = scmp.ne.s32.totalorder %s130, %s133
    %p139 = scmp.eq.s32.totalorder %s15, 0
    %p140 = por %p138, %p139
    %p141 = scmp.ne.s32.totalorder %s130, %s133
    %p142 = scmp.eq.s32.totalorder %s20, 1
    %p143 = por %p141, %p142
    %p144 = scmp.ne.s32.totalorder %s133, %s134
    %p145 = scmp.eq.s32.totalorder %s20, 0
    %p146 = por %p144, %p145
    %p147 = scmp.ne.s32.totalorder %s133, %s134
    %p148 = scmp.eq.s32.totalorder %s21, 1
    %p149 = por %p147, %p148
    %p151 = scmp.ne.s32.totalorder %s134, %s150
    %p152 = scmp.eq.s32.totalorder %s21, 0
    %p153 = por %p151, %p152
    %p154 = scmp.le.s32.totalorder 1, %s15
    %p155 = scmp.lt.s32.totalorder %s15, 3
    %p156 = pnand %p154, %p155
    %p157 = pneg %p156
    // Predicated region
    $region9: #{vit_embedding_pallas.2} parent=5 // pred_check
      _
    $region10: #{vit_embedding_pallas.2} parent=5 // pred_check_branch
      %159 = sbr.rel (%p156) target = $region12
    $region11: #{vit_embedding_pallas.2} parent=5 // pred_region
      %s160 = ssub.s32 %s15, 1
      // Predicated region
      $region13: #{vit_embedding_pallas.2} parent=11 // pred_check
        %p161 = pneg %p88
      $region14: #{vit_embedding_pallas.2} parent=11 // pred_check_branch
        %163 = sbr.rel (%p161) target = $region16
      $region15: #{vit_embedding_pallas.2} parent=11 // pred_region
        %p164 = scmp.lt.s32.totalorder %s26, 0
        %s165 = scalar_select %p164, %s26, 0
        %s166 = smul.addr %s165, 4
        %s167 = scalar_lea.vmem %s0, %s166
      $region16: #{vit_embedding_pallas.2} parent=11 // pred_fallthru
        _
      // Predicated region
      $region17: #{vit_embedding_pallas.2} parent=11 // pred_check
        %p168 = pneg %p116
      $region18: #{vit_embedding_pallas.2} parent=11 // pred_check_branch
        %170 = sbr.rel (%p168) target = $region20
      $region19: #{vit_embedding_pallas.2} parent=11 // pred_region
        %s171 = smul.u32 3, %s25
        %p172 = scmp.lt.s32.totalorder %s171, 2
        %s173 = scalar_select %p172, %s171, 2
        %p174 = scmp.lt.s32.totalorder %s26, 0
        %s175 = scalar_select %p174, %s26, 0
        %s176 = sadd.s32 %s175, %s173
        %s177 = smul.addr %s176, 8
        %s178 = scalar_lea.vmem %s1, %s177
        %s179 = smul.u32 3, %s25
      $region20: #{vit_embedding_pallas.2} parent=11 // pred_fallthru
        _
    $region12: #{vit_embedding_pallas.2} parent=5 // pred_fallthru
      _
    %p180 = scmp.lt.s32.totalorder %s15, 2
    // Predicated region
    $region21: #{vit_embedding_pallas.2} parent=5 // pred_check
      %p181 = pneg %p180
    $region22: #{vit_embedding_pallas.2} parent=5 // pred_check_branch
      %183 = sbr.rel (%p181) target = $region24
    $region23: #{vit_embedding_pallas.2} parent=5 // pred_region
      // Predicated region
      $region25: #{vit_embedding_pallas.2} parent=23 // pred_check
        %p184 = pneg %p56
      $region26: #{vit_embedding_pallas.2} parent=23 // pred_check_branch
        %186 = sbr.rel (%p184) target = $region28
      $region27: #{vit_embedding_pallas.2} parent=23 // pred_region
        %s187 = smul.u32 3, %s22
        %s188 = ssub.s32 1, %s187
        %s189 = ssub.s32 3, %s188
        %s190 = smul.u32 4, %s189
        %p191 = scmp.lt.s32.totalorder %s24, 1
        %s192 = scalar_select %p191, %s24, 1
        %s193 = ssub.s32 %s187, 1
        %p194 = scmp.lt.s32.totalorder %s193, 1
        %s195 = scalar_select %p194, %s193, 1
        %s196 = smul.addr %s192, 2
        %s197 = sadd.s32 %s195, %s196
        %s198 = smul.addr %s197, 4
        %s199 = scalar_lea.vmem %s2, %s198
        %s200 = smul.u32 3, %s22
        %s201 = ssub.s32 1, %s200
        %s202 = ssub.s32 3, %s201
        %s203 = smul.u32 4, %s202
      $region28: #{vit_embedding_pallas.2} parent=23 // pred_fallthru
        _
    $region24: #{vit_embedding_pallas.2} parent=5 // pred_fallthru
      _
    %p204 = scmp.le.s32.totalorder 1, %s15
    %p205 = scmp.lt.s32.totalorder %s15, 3
    %p206 = pnand %p204, %p205
    %p207 = pneg %p206
    // Predicated region
    $region29: #{vit_embedding_pallas.2} parent=5 // pred_check
      _
    $region30: #{vit_embedding_pallas.2} parent=5 // pred_check_branch
      %209 = sbr.rel (%p206) target = $region32
    $region31: #{vit_embedding_pallas.2} parent=5 // pred_region
      #allocation7 [shape = 'u8[6144]{0}', space=vmem, size = 0x1800, dematerialized = true, scoped, tag = 'FusionAdapter Buffer %fusion.1 = bf16[2,17,64]{2,1,0:T(8,128)(2,1)} fusion(%param_2.3, %param_3), kind=kLoop, calls=%fused_computation.3.clone, metadata={op_name="jit(vit_embedding_pallas)/jit(_pad)/pad" stack_frame_id=9}']
      %s210 = ssub.s32 %s15, 1
      %s211 = smul.u32 3, %s25
      %s212 = ssub.s32 1, %s211
      %s213 = ssub.s32 3, %s212
      %s214 = smul.u32 4, %s213
      %p215 = scmp.lt.s32.totalorder %s27, 1
      %s216 = scalar_select %p215, %s27, 1
      %s217 = ssub.s32 %s211, 1
      %p218 = scmp.lt.s32.totalorder %s217, 1
      %s219 = scalar_select %p218, %s217, 1
      %s220 = smul.addr %s216, 2
      %s221 = sadd.s32 %s219, %s220
      %s222 = smul.addr %s221, 4
      %s223 = scalar_lea.vmem %s2, %s222
      %p224 = pneg %p62
      %p225 = pneg %p59
      %p226 = scmp.lt.s32.totalorder %s26, 0
      %s227 = scalar_select %p226, %s26, 0
      %s228 = smul.addr %s227, 4
      %s229 = scalar_lea.vmem %s0, %s228
      %p230 = pneg %p88
      %p231 = pneg %p85
      %s232 = smul.u32 3, %s25
      %p233 = scmp.lt.s32.totalorder %s232, 2
      %s234 = scalar_select %p233, %s232, 2
      %p235 = scmp.lt.s32.totalorder %s26, 0
      %s236 = scalar_select %p235, %s26, 0
      %s237 = sadd.s32 %s236, %s234
      %s238 = smul.addr %s237, 8
      %s239 = scalar_lea.vmem %s1, %s238
      %p240 = pneg %p116
      %p241 = pneg %p113
      %p242 = pneg %p146
      %p243 = pneg %p143
      %s244 = smul.u32 3, %s25
      %p245 = scmp.lt.s32.totalorder %s27, 1
      %s246 = scalar_select %p245, %s27, 1
      %p247 = scmp.lt.s32.totalorder %s244, 2
      %s248 = scalar_select %p247, %s244, 2
      %p249 = scmp.lt.s32.totalorder %s26, 0
      %s250 = scalar_select %p249, %s26, 0
      %s251 = sadd.s32 %s250, %s248
      %s252 = smul.addr %s246, 3
      %s253 = sadd.s32 %s251, %s252
      %s254 = smul.addr %s253, 8
      %s255 = scalar_lea.vmem %s4, %s254
      %s256 = smul.u32 3, %s25
      %s257 = ssub.s32 1, %s256
      %s258 = ssub.s32 3, %s257
      %s259 = smul.u32 4, %s258
      %p260 = scmp.lt.s32.totalorder %s27, 1
      %s261 = scalar_select %p260, %s27, 1
      %s262 = ssub.s32 %s256, 1
      %p263 = scmp.lt.s32.totalorder %s262, 1
      %s264 = scalar_select %p263, %s262, 1
      %s265 = smul.addr %s261, 2
      %s266 = sadd.s32 %s264, %s265
      %s267 = smul.addr %s266, 4
      %s268 = scalar_lea.vmem %s2, %s267
      %s269 = smul.u32 3, %s25
      %s270 = ssub.s32 1, %s269
      %s271 = ssub.s32 3, %s270
      %s272 = smul.u32 4, %s271
      %p273 = scmp.lt.s32.totalorder %s26, 0
      %s274 = scalar_select %p273, %s26, 0
      %s275 = smul.addr %s274, 4
      %s276 = scalar_lea.vmem %s0, %s275
      %s277 = smul.u32 3, %s25
      %p278 = scmp.lt.s32.totalorder %s277, 2
      %s279 = scalar_select %p278, %s277, 2
      %p280 = scmp.lt.s32.totalorder %s26, 0
      %s281 = scalar_select %p280, %s26, 0
      %s282 = sadd.s32 %s281, %s279
      %s283 = smul.addr %s282, 8
      %s284 = scalar_lea.vmem %s1, %s283
      %s285 = smul.u32 3, %s25
      %s286 = smul.u32 3, %s25
      %p287 = scmp.lt.s32.totalorder %s27, 1
      %s288 = scalar_select %p287, %s27, 1
      %p289 = scmp.lt.s32.totalorder %s286, 2
      %s290 = scalar_select %p289, %s286, 2
      %p291 = scmp.lt.s32.totalorder %s26, 0
      %s292 = scalar_select %p291, %s26, 0
      %s293 = sadd.s32 %s292, %s290
      %s294 = smul.addr %s288, 3
      %s295 = sadd.s32 %s293, %s294
      %s296 = smul.addr %s295, 8
      %s297 = scalar_lea.vmem %s4, %s296
      %s298 = smul.u32 3, %s25
      %s299 = ssub.s32 %s269, 1
      %p300 = scmp.lt.s32.totalorder %s299, 0
      %s301 = scalar_select %p300, 0, 255
      %s302 = sshrl.u32 %s301, 1
      %s303 = sor.u32 %s301, %s302
      %s304 = sand.u32 %s303, 85
      %s305 = sshrl.u32 %s304, 1
      %s306 = sor.u32 %s304, %s305
      %s307 = sand.u32 51, %s306
      %s308 = sshrl.u32 %s307, 2
      %s309 = sor.u32 %s307, %s308
      %s310 = sand.u32 15, %s309
      %v311 = vld [vmem:[%s268] sm:%s310]
      %v312 = vunpack.c.l.bf16 %v311
      %v313 = vunpack.c.h.bf16 %v311
      %s314 = ssub.s32 %s269, 1
      %v315 = vstv %s314
      %vm316 = vcmp.lt.s32.totalorder %v315, 0
      %v317 = vsel %vm316, %v10, %v312
      %v318 = vlaneseq
      %v319 = vand.u32 %v318, 127
      %vm321 = vcmp.lt.s32.totalorder %v319, 64
      %v322 = vsel %vm321, %v317, %v10
      %s323 = scalar_lea.vmem %s268, 4
      %v324 = vld [vmem:[%s323] sm:$0xf]
      %v325 = vunpack.c.l.bf16 %v324
      %v326 = vunpack.c.h.bf16 %v324
      %v327 = vlaneseq
      %v328 = vand.u32 %v327, 127
      %vm330 = vcmp.lt.s32.totalorder %v328, 64
      %v331 = vsel %vm330, %v325, %v10
      %vm332 = vcmask 1046528
      %v333 = vsel %vm332, %v331, %v322
      %v334 = vrot.slane %v333, 7
      %v335 = vpack.c.bf16 0.0, %v334
      %s337 = ssub.s32 16, 1
      %338 = vst [vmem:[#allocation7] sm:%s337] %v335
      %s339 = scalar_lea.vmem %s268, 8
      %v340 = vld [vmem:[%s339] sm:$0xf]
      %v341 = vunpack.c.l.bf16 %v340
      %v342 = vunpack.c.h.bf16 %v340
      %v343 = vlaneseq
      %v344 = vand.u32 %v343, 127
      %vm346 = vcmp.lt.s32.totalorder %v344, 64
      %v347 = vsel %vm346, %v341, %v10
      %vm348 = vcmask 1046528
      %v349 = vsel %vm348, %v347, %v331
      %v350 = vrot.slane %v349, 7
      %s351 = scalar_lea.vmem [#allocation7], 4
      %v352 = vpack.c.bf16 0.0, %v350
      %s354 = ssub.s32 16, 1
      %355 = vst [vmem:[%s351] sm:%s354] %v352
      %vm356 = vcmask 1046528
      %v357 = vsel %vm356, %v10, %v347
      %v358 = vrot.slane %v357, 7
      %s359 = scalar_lea.vmem [#allocation7], 8
      %v360 = vpack.c.bf16 0.0, %v358
      %s362 = ssub.s32 16, 1
      %363 = vst [vmem:[%s359] sm:%s362] %v360
      %v365 = vld [vmem:[#allocation7] sm:$0xf]
      %v366 = vld [vmem:[#allocation7 + $0x4] sm:$0xf]
      %v367 = vld [vmem:[#allocation7 + $0x8] sm:$0x1]
      %v368 = vld [vmem:[%s276] sm:$0xf]
      %v369 = vld [vmem:[%s276 + $0x4] sm:$0xf]
      %v370 = vld [vmem:[%s276 + $0x8] sm:$0xf]
      %v371 = vld [vmem:[%s276 + $0xc] sm:$0xf]
      %v372 = vld [vmem:[%s276 + $0x10] sm:$0xf]
      %v373 = vld [vmem:[%s276 + $0x14] sm:$0xf]
      %v374 = vld [vmem:[%s276 + $0x18] sm:$0xf]
      %v375 = vld [vmem:[%s276 + $0x1c] sm:$0xf]
      %v376 = vld [vmem:[%s284] sm:$0xff]
      %v377 = vld [vmem:[%s284 + $0x8] sm:$0xff]
      %v378 = vld [vmem:[%s284 + $0x10] sm:$0x1]
      %v382 = vunpack.c.l.b16 %v365
      %v383 = vunpack.c.l.b16 %v366
      %v384 = vunpack.c.l.b16 %v367
      %v385 = vpack.c.b16 %v383, %v382
      %v386 = vpack.c.b16 %v384, %v384
      %v395 = vunpack.c.l.b16 %v368
      %v396 = vunpack.c.l.b16 %v369
      %v397 = vunpack.c.l.b16 %v370
      %v398 = vunpack.c.l.b16 %v371
      %v399 = vunpack.c.l.b16 %v372
      %v400 = vunpack.c.l.b16 %v373
      %v401 = vunpack.c.l.b16 %v374
      %v402 = vunpack.c.l.b16 %v375
      %v403 = vpack.c.b16 %v396, %v395
      %v404 = vpack.c.b16 %v398, %v397
      %v405 = vpack.c.b16 %v400, %v399
      %v406 = vpack.c.b16 %v402, %v401
      %vm411 = vcmask 523264
      %v413 = vsel %vm411, %v385, 0
      %v416 = vsel %vm411, %v386, 0
      %418 = vmatpush.bf16.msra.mxu0 0
      %419 = vmatpush.bf16.msra.mxu0 0
      %420 = vmatpush.bf16.msra.mxu0 0
      %421 = vmatpush.bf16.msra.mxu0 0
      %422 = vmatpush.bf16.msra.mxu0 %v406
      %423 = vmatpush.bf16.msra.mxu0 %v405
      %424 = vmatpush.bf16.msra.mxu0 %v404
      %425 = vmatpush.bf16.msra.mxu0 %v403
      %426 = vmatmul.bf16.gmra.mxu0 %v413
      %v427 = vpop.f32.mrf.mxu0
      %v428 = vadd.f32 %v376, %v427
      %v429 = vpop.f32.mrf.mxu0
      %v430 = vadd.f32 %v377, %v429
      %431 = vmatmul.bf16.gmra.mxu0 %v416
      %v432 = vpop.f32.mrf.mxu0
      %v433 = vadd.f32 %v378, %v432
      %v434 = vpop.f32.mrf.mxu0
      %435 = vdwg.mxu0
      %vm436 = vcmask 261120
      %437 = vst.msk [vmem:[%s297] sm:$0xff] %vm436, %v428
      %438 = vst.msk [vmem:[%s297 + $0x8] sm:$0xff] %vm436, %v430
      %vm439 = vcmask 253952
      %440 = vst.msk [vmem:[%s297 + $0x10] sm:$0x1] %vm439, %v433
      %s441 = smul.u32 3, %s25
      %p442 = scmp.lt.s32.totalorder %s27, 1
      %s443 = scalar_select %p442, %s27, 1
      %p444 = scmp.lt.s32.totalorder %s441, 2
      %s445 = scalar_select %p444, %s441, 2
      %p446 = scmp.lt.s32.totalorder %s26, 0
      %s447 = scalar_select %p446, %s26, 0
      %s448 = sadd.s32 %s447, %s445
      %s449 = smul.addr %s443, 3
      %s450 = sadd.s32 %s448, %s449
      %s451 = smul.addr %s450, 8
      %s452 = scalar_lea.vmem %s4, %s451
      // Predicated region
      $region33: #{vit_embedding_pallas.2} parent=31 // pred_check
        %p453 = pneg %p143
      $region34: #{vit_embedding_pallas.2} parent=31 // pred_check_branch
        %455 = sbr.rel (%p453) target = $region36
      $region35: #{vit_embedding_pallas.2} parent=31 // pred_region
        %s456 = smul.u32 3, %s25
      $region36: #{vit_embedding_pallas.2} parent=31 // pred_fallthru
        _
    $region32: #{vit_embedding_pallas.2} parent=5 // pred_fallthru
      _
    %p457 = scmp.le.s32.totalorder 2, %s15
    // Predicated region
    $region37: #{vit_embedding_pallas.2} parent=5 // pred_check
      %p458 = pneg %p457
    $region38: #{vit_embedding_pallas.2} parent=5 // pred_check_branch
      %460 = sbr.rel (%p458) target = $region40
    $region39: #{vit_embedding_pallas.2} parent=5 // pred_region
      %s461 = ssub.s32 %s15, 2
      // Predicated region
      $region41: #{vit_embedding_pallas.2} parent=39 // pred_check
        %p462 = pneg %p149
      $region42: #{vit_embedding_pallas.2} parent=39 // pred_check_branch
        %464 = sbr.rel (%p462) target = $region44
      $region43: #{vit_embedding_pallas.2} parent=39 // pred_region
        %s465 = smul.u32 3, %s28
        %p466 = scmp.lt.s32.totalorder %s30, 1
        %s467 = scalar_select %p466, %s30, 1
        %p468 = scmp.lt.s32.totalorder %s465, 2
        %s469 = scalar_select %p468, %s465, 2
        %p470 = scmp.lt.s32.totalorder %s29, 0
        %s471 = scalar_select %p470, %s29, 0
        %s472 = sadd.s32 %s471, %s469
        %s473 = smul.addr %s467, 3
        %s474 = sadd.s32 %s472, %s473
        %s475 = smul.addr %s474, 8
        %s476 = scalar_lea.vmem %s4, %s475
      $region44: #{vit_embedding_pallas.2} parent=39 // pred_fallthru
        _
    $region40: #{vit_embedding_pallas.2} parent=5 // pred_fallthru
      _
  $region6: #{vit_embedding_pallas.2} parent=0 // loop_footer
    %s19 = sadd.s32 1, %s15
  $region7: #{vit_embedding_pallas.2} parent=0 // loop_footer_branch
    %14 = sbr.rel target = $region3
  $region8: #{vit_embedding_pallas.2} parent=0 // loop_exit
    _

</llo_original>
